<compile_context>
chip_gen: v5e
topology: v5e:2x2
jax: 0.10.0
libtpu: 0.0.40
codegen_flags: <defaults>
</compile_context>

<pallas_src>
import jax
import jax.numpy as jnp
from jax.experimental import pallas as pl
from jax.experimental.pallas import tpu as pltpu


def coord_att_kernel(x_ref, w1_ref, b1_ref, wh_ref, bh_ref, ww_ref, bw_ref,
                     poolh_ref, poolw_ref, exph_ref, expw_ref, out_ref):
    nb = x_ref.shape[0]
    h = exph_ref.shape[0]
    w = expw_ref.shape[0]

    pool_h = poolh_ref[...]                       # (HW, H)   mean over W
    pool_w = poolw_ref[...]                       # (HW, W)   mean over H

    xb = [x_ref[b].astype(jnp.float32) for b in range(nb)]

    # --- coordinate pooling, packed along lanes as [H of b0..bN | W of b0..bN] ---
    pooled_h = jnp.concatenate(
        [jnp.dot(xb[b], pool_h, preferred_element_type=jnp.float32)
         for b in range(nb)], axis=1)             # (C, nb*H)
    pooled_w = jnp.concatenate(
        [jnp.dot(xb[b], pool_w, preferred_element_type=jnp.float32)
         for b in range(nb)], axis=1)             # (C, nb*W)
    pooled = jnp.concatenate([pooled_h, pooled_w], axis=1)   # (C, nb*(H+W))

    # --- conv1 (1x1, BatchNorm folded into weight/bias) + h_swish ---
    y = jnp.dot(w1_ref[...], pooled,
                preferred_element_type=jnp.float32) + b1_ref[...]   # (mip, nb*(H+W))
    y = y * jnp.clip(y + 3.0, 0.0, 6.0) * (1.0 / 6.0)

    nh = nb * h
    y_h = y[:, :nh]                               # (mip, nb*H)
    y_w = y[:, nh:]                               # (mip, nb*W)

    # --- conv_h / conv_w (1x1) + sigmoid, only over the columns each needs ---
    a_h_all = jax.nn.sigmoid(
        jnp.dot(wh_ref[...], y_h, preferred_element_type=jnp.float32) + bh_ref[...])
    a_w_all = jax.nn.sigmoid(
        jnp.dot(ww_ref[...], y_w, preferred_element_type=jnp.float32) + bw_ref[...])

    exp_h = exph_ref[...]                         # (H, HW), 0/1
    exp_w = expw_ref[...]                         # (W, HW), 0/1
    for b in range(nb):
        a_h = a_h_all[:, b * h:(b + 1) * h]       # (oup, H)
        a_w = a_w_all[:, b * w:(b + 1) * w]       # (oup, W)
        # Expand gates back to the lane-dense (C, H*W) layout on the MXU.
        gate = (jnp.dot(a_h, exp_h, preferred_element_type=jnp.float32) *
                jnp.dot(a_w, exp_w, preferred_element_type=jnp.float32))
        out_ref[b] = (xb[b] * gate).astype(out_ref.dtype)


def _choose_batch_block(n, c, hw, h_plus_w, itemsize):
    """Pick how many batch elements to process per grid step."""
    # Keep 2x input + 2x output double-buffered blocks within ~40 MiB so the
    # same choice is safe on v7x's 64 MiB VMEM (v5e/v6e have more headroom).
    budget = 40 * 1024 * 1024
    per_elem = c * hw * itemsize
    max_by_vmem = max(1, budget // (4 * per_elem))
    # Pack >= 256 pooled lanes into the 1x1-conv matmuls (v6e/v7x MXU width).
    lane_target = max(1, -(-256 // h_plus_w))
    nb = int(min(n, max_by_vmem, lane_target))
    while n % nb != 0:
        nb -= 1
    # Prefer >= 2 grid steps so ("parallel",) can split work across TensorCores.
    if n // nb < 2:
        for cand in range(nb, 0, -1):
            if n % cand == 0 and n // cand >= 2:
                nb = cand
                break
    return nb


def coord_att(x, params):
    n, c, h, w = x.shape
    mip, inp = params["w1"].shape
    oup = params["wh"].shape[0]
    assert inp == c and oup == c, "CoordAtt requires inp == oup == C"

    hw = h * w
    hpw = h + w

    # Fold eval-mode BatchNorm (per-channel affine) into conv1.
    bn_s, bn_b = params["bn_scale"], params["bn_shift"]
    w1f = (bn_s * params["w1"]).astype(jnp.float32)              # (mip, C)
    b1f = (bn_s * params["b1"] + bn_b).astype(jnp.float32)       # (mip, 1)
    wh = params["wh"].astype(jnp.float32)
    bh = params["bh"].astype(jnp.float32)
    ww = params["ww"].astype(jnp.float32)
    bw = params["bw"].astype(jnp.float32)

    eye_h = jnp.eye(h, dtype=jnp.float32)
    eye_w = jnp.eye(w, dtype=jnp.float32)
    ones_h = jnp.ones((h,), jnp.float32)
    ones_w = jnp.ones((w,), jnp.float32)
    # Pooling matrices: (HW, H) averages each row over W; (HW, W) averages
    # each column over H.
    pool_h_mat = jnp.kron(eye_h, ones_w[:, None]) / w            # (HW, H)
    pool_w_mat = jnp.kron(ones_h[:, None], eye_w) / h            # (HW, W)
    # Expansion matrices: broadcast a_h over W and a_w over H, flattened.
    exp_h = jnp.kron(eye_h, ones_w[None, :])                     # (H, HW)
    exp_w = jnp.kron(ones_h[None, :], eye_w)                     # (W, HW)

    x_flat = x.reshape(n, c, hw)
    itemsize = x.dtype.itemsize

    nb = _choose_batch_block(n, c, hw, hpw, itemsize)
    grid = (n // nb,)

    block_bytes = nb * c * hw * itemsize
    vmem_limit = int(min(48 * 2 ** 20, max(32 * 2 ** 20, 4 * block_bytes + 4 * 2 ** 20)))

    def full_spec(shape):
        zeros = (0,) * len(shape)
        return pl.BlockSpec(shape, lambda i, _z=zeros: _z)

    grid_spec = pltpu.PrefetchScalarGridSpec(
        num_scalar_prefetch=0,
        grid=grid,
        in_specs=[
            pl.BlockSpec((nb, c, hw), lambda i: (i, 0, 0)),      # x (flattened)
            full_spec((mip, c)),      # conv1 weight (BN folded)
            full_spec((mip, 1)),      # conv1 bias   (BN folded)
            full_spec((oup, mip)),    # conv_h weight
            full_spec((oup, 1)),      # conv_h bias
            full_spec((oup, mip)),    # conv_w weight
            full_spec((oup, 1)),      # conv_w bias
            full_spec((hw, h)),       # pooling matrix (mean over W)
            full_spec((hw, w)),       # pooling matrix (mean over H)
            full_spec((h, hw)),       # gate expansion (H -> H*W)
            full_spec((w, hw)),       # gate expansion (W -> H*W)
        ],
        out_specs=pl.BlockSpec((nb, c, hw), lambda i: (i, 0, 0)),
    )

    out = pl.pallas_call(
        coord_att_kernel,
        out_shape=jax.ShapeDtypeStruct((n, c, hw), x.dtype),
        grid_spec=grid_spec,
        compiler_params=pltpu.CompilerParams(
            dimension_semantics=("parallel",),
            vmem_limit_bytes=vmem_limit,
        ),
    )(x_flat, w1f, b1f, wh, bh, ww, bw, pool_h_mat, pool_w_mat, exp_h, exp_w)
    return out.reshape(n, c, h, w)


def make_params(key, inp, oup, reduction=4):
    mip = max(8, inp // reduction)
    ks = jax.random.split(key, 8)
    w1 = jax.random.normal(ks[0], (mip, inp), jnp.float32) * 0.2
    b1 = jax.random.normal(ks[1], (mip, 1), jnp.float32) * 0.1
    wh = jax.random.normal(ks[2], (oup, mip), jnp.float32) * 0.2
    bh = jax.random.normal(ks[3], (oup, 1), jnp.float32) * 0.1
    ww = jax.random.normal(ks[4], (oup, mip), jnp.float32) * 0.2
    bw = jax.random.normal(ks[5], (oup, 1), jnp.float32) * 0.1
    # BatchNorm2d eval-mode params folded to per-channel scale/shift.
    gamma = 1.0 + 0.1 * jax.random.normal(ks[6], (mip, 1), jnp.float32)
    beta = 0.1 * jax.random.normal(ks[7], (mip, 1), jnp.float32)
    rmean = jnp.zeros((mip, 1), jnp.float32)
    rvar = jnp.ones((mip, 1), jnp.float32)
    eps = 1e-5
    bn_scale = gamma / jnp.sqrt(rvar + eps)
    bn_shift = beta - rmean * bn_scale
    return dict(w1=w1, b1=b1, bn_scale=bn_scale, bn_shift=bn_shift,
                wh=wh, bh=bh, ww=ww, bw=bw)


def ref_coord_att(x, p):
    """Pure-JAX reference mirroring the PyTorch forward (eval-mode BN)."""
    x_h = jnp.mean(x, axis=3)                       # (N, C, H)
    x_w = jnp.mean(x, axis=2)                       # (N, C, W)
    h = x.shape[2]
    y = jnp.concatenate([x_h, x_w], axis=2)         # (N, C, H+W)
    y = jnp.einsum("mc,nct->nmt", p["w1"], y) + p["b1"][None]
    y = y * p["bn_scale"][None] + p["bn_shift"][None]
    y = y * jnp.clip(y + 3.0, 0.0, 6.0) / 6.0
    y_h, y_w = y[:, :, :h], y[:, :, h:]
    a_h = jax.nn.sigmoid(jnp.einsum("om,nmt->not", p["wh"], y_h) + p["bh"][None])
    a_w = jax.nn.sigmoid(jnp.einsum("om,nmt->not", p["ww"], y_w) + p["bw"][None])
    return x * a_w[:, :, None, :] * a_h[:, :, :, None]


if __name__ == "__main__":
    key = jax.random.PRNGKey(0)
    kx, kp = jax.random.split(key)

    N, C, H, W = 2, 4, 16, 16
    x = jax.random.normal(kx, (N, C, H, W), jnp.float32)
    params = make_params(kp, inp=C, oup=C, reduction=4)

    out = coord_att(x, params)
    out = jax.block_until_ready(out)

    ref = ref_coord_att(x, params)
    assert out.shape == (N, C, H, W)
    assert jnp.allclose(out, ref, atol=1e-4, rtol=1e-4), "mismatch vs JAX reference"

    print("KERNEL_OK")
</pallas_src>

<mosaic_0001>
module attributes {stable_mosaic.version = 11 : i64} {
  func.func @coord_att_kernel(%arg0: i32, %arg1: memref<1x4x256xf32, #tpu.memory_space<vmem>>, %arg2: memref<8x4xf32, #tpu.memory_space<vmem>>, %arg3: memref<8x1xf32, #tpu.memory_space<vmem>>, %arg4: memref<4x8xf32, #tpu.memory_space<vmem>>, %arg5: memref<4x1xf32, #tpu.memory_space<vmem>>, %arg6: memref<4x8xf32, #tpu.memory_space<vmem>>, %arg7: memref<4x1xf32, #tpu.memory_space<vmem>>, %arg8: memref<256x16xf32, #tpu.memory_space<vmem>>, %arg9: memref<256x16xf32, #tpu.memory_space<vmem>>, %arg10: memref<16x256xf32, #tpu.memory_space<vmem>>, %arg11: memref<16x256xf32, #tpu.memory_space<vmem>>, %arg12: memref<1x4x256xf32, #tpu.memory_space<vmem>>) attributes {dimension_semantics = [#tpu.dimension_semantics<parallel>], iteration_bounds = array<i64: 2>, scalar_prefetch = 0 : i64, scratch_operands = 0 : i64, tpu.core_type = #tpu.core_type<tc>, window_params = [{transform_indices = @transform_0, window_bounds = array<i64: 1, 4, 256>}, {pipeline_mode = #tpu.pipeline_mode<synchronous>, transform_indices = @transform_1, window_bounds = array<i64: 8, 4>}, {pipeline_mode = #tpu.pipeline_mode<synchronous>, transform_indices = @transform_2, window_bounds = array<i64: 8, 1>}, {pipeline_mode = #tpu.pipeline_mode<synchronous>, transform_indices = @transform_3, window_bounds = array<i64: 4, 8>}, {pipeline_mode = #tpu.pipeline_mode<synchronous>, transform_indices = @transform_4, window_bounds = array<i64: 4, 1>}, {pipeline_mode = #tpu.pipeline_mode<synchronous>, transform_indices = @transform_5, window_bounds = array<i64: 4, 8>}, {pipeline_mode = #tpu.pipeline_mode<synchronous>, transform_indices = @transform_6, window_bounds = array<i64: 4, 1>}, {pipeline_mode = #tpu.pipeline_mode<synchronous>, transform_indices = @transform_7, window_bounds = array<i64: 256, 16>}, {pipeline_mode = #tpu.pipeline_mode<synchronous>, transform_indices = @transform_8, window_bounds = array<i64: 256, 16>}, {pipeline_mode = #tpu.pipeline_mode<synchronous>, transform_indices = @transform_9, window_bounds = array<i64: 16, 256>}, {pipeline_mode = #tpu.pipeline_mode<synchronous>, transform_indices = @transform_10, window_bounds = array<i64: 16, 256>}, {transform_indices = @transform_11, window_bounds = array<i64: 1, 4, 256>}]} {
    %c0 = arith.constant 0 : index
    %c0_0 = arith.constant 0 : index
    %0 = vector.load %arg8[%c0, %c0_0] : memref<256x16xf32, #tpu.memory_space<vmem>>, vector<256x16xf32>
    %c0_1 = arith.constant 0 : index
    %c0_2 = arith.constant 0 : index
    %1 = vector.load %arg9[%c0_1, %c0_2] : memref<256x16xf32, #tpu.memory_space<vmem>>, vector<256x16xf32>
    %c0_3 = arith.constant 0 : index
    %c0_4 = arith.constant 0 : index
    %c0_5 = arith.constant 0 : index
    %2 = vector.load %arg1[%c0_3, %c0_4, %c0_5] : memref<1x4x256xf32, #tpu.memory_space<vmem>>, vector<1x4x256xf32>
    %3 = vector.shape_cast %2 : vector<1x4x256xf32> to vector<4x256xf32>
    %cst = arith.constant dense<0.000000e+00> : vector<4x16xf32>
    %4 = tpu.matmul %3, %0, %cst {dimension_numbers = #tpu.dot_dimension_numbers<[1], [0], [0], [1], [0, 0, 1, 1], [], []>} : vector<4x256xf32>, vector<256x16xf32>, vector<4x16xf32> -> vector<4x16xf32>
    %cst_6 = arith.constant dense<0.000000e+00> : vector<4x16xf32>
    %5 = tpu.matmul %3, %1, %cst_6 {dimension_numbers = #tpu.dot_dimension_numbers<[1], [0], [0], [1], [0, 0, 1, 1], [], []>} : vector<4x256xf32>, vector<256x16xf32>, vector<4x16xf32> -> vector<4x16xf32>
    %6 = tpu.concatenate %4, %5 in 1 : vector<4x16xf32>, vector<4x16xf32> -> vector<4x32xf32>
    %c0_7 = arith.constant 0 : index
    %c0_8 = arith.constant 0 : index
    %7 = vector.load %arg2[%c0_7, %c0_8] : memref<8x4xf32, #tpu.memory_space<vmem>>, vector<8x4xf32>
    %cst_9 = arith.constant dense<0.000000e+00> : vector<8x32xf32>
    %8 = tpu.matmul %7, %6, %cst_9 {dimension_numbers = #tpu.dot_dimension_numbers<[1], [0], [0], [1], [0, 0, 1, 1], [], []>} : vector<8x4xf32>, vector<4x32xf32>, vector<8x32xf32> -> vector<8x32xf32>
    %c0_10 = arith.constant 0 : index
    %c0_11 = arith.constant 0 : index
    %9 = vector.load %arg3[%c0_10, %c0_11] : memref<8x1xf32, #tpu.memory_space<vmem>>, vector<8x1xf32>
    %10 = vector.broadcast %9 : vector<8x1xf32> to vector<8x32xf32>
    %11 = arith.addf %8, %10 : vector<8x32xf32>
    %cst_12 = arith.constant 3.000000e+00 : f32
    %12 = vector.broadcast %cst_12 : f32 to vector<8x32xf32>
    %13 = arith.addf %11, %12 : vector<8x32xf32>
    %cst_13 = arith.constant 0.000000e+00 : f32
    %cst_14 = arith.constant 6.000000e+00 : f32
    %14 = vector.broadcast %cst_13 : f32 to vector<8x32xf32>
    %15 = arith.maximumf %14, %13 : vector<8x32xf32>
    %16 = vector.broadcast %cst_14 : f32 to vector<8x32xf32>
    %17 = arith.minimumf %16, %15 : vector<8x32xf32>
    %18 = arith.mulf %11, %17 : vector<8x32xf32>
    %cst_15 = arith.constant 0.166666672 : f32
    %19 = vector.broadcast %cst_15 : f32 to vector<8x32xf32>
    %20 = arith.mulf %18, %19 : vector<8x32xf32>
    %21 = vector.extract_strided_slice %20 {offsets = [0, 0], sizes = [8, 16], strides = [1, 1]} : vector<8x32xf32> to vector<8x16xf32>
    %22 = vector.extract_strided_slice %20 {offsets = [0, 16], sizes = [8, 16], strides = [1, 1]} : vector<8x32xf32> to vector<8x16xf32>
    %c0_16 = arith.constant 0 : index
    %c0_17 = arith.constant 0 : index
    %23 = vector.load %arg4[%c0_16, %c0_17] : memref<4x8xf32, #tpu.memory_space<vmem>>, vector<4x8xf32>
    %cst_18 = arith.constant dense<0.000000e+00> : vector<4x16xf32>
    %24 = tpu.matmul %23, %21, %cst_18 {dimension_numbers = #tpu.dot_dimension_numbers<[1], [0], [0], [1], [0, 0, 1, 1], [], []>} : vector<4x8xf32>, vector<8x16xf32>, vector<4x16xf32> -> vector<4x16xf32>
    %c0_19 = arith.constant 0 : index
    %c0_20 = arith.constant 0 : index
    %25 = vector.load %arg5[%c0_19, %c0_20] : memref<4x1xf32, #tpu.memory_space<vmem>>, vector<4x1xf32>
    %26 = vector.broadcast %25 : vector<4x1xf32> to vector<4x16xf32>
    %27 = arith.addf %24, %26 : vector<4x16xf32>
    %28 = arith.negf %27 : vector<4x16xf32>
    %29 = math.exp %28 : vector<4x16xf32>
    %cst_21 = arith.constant 1.000000e+00 : f32
    %30 = vector.broadcast %cst_21 : f32 to vector<4x16xf32>
    %31 = arith.addf %30, %29 : vector<4x16xf32>
    %32 = arith.divf %30, %31 : vector<4x16xf32>
    %c0_22 = arith.constant 0 : index
    %c0_23 = arith.constant 0 : index
    %33 = vector.load %arg6[%c0_22, %c0_23] : memref<4x8xf32, #tpu.memory_space<vmem>>, vector<4x8xf32>
    %cst_24 = arith.constant dense<0.000000e+00> : vector<4x16xf32>
    %34 = tpu.matmul %33, %22, %cst_24 {dimension_numbers = #tpu.dot_dimension_numbers<[1], [0], [0], [1], [0, 0, 1, 1], [], []>} : vector<4x8xf32>, vector<8x16xf32>, vector<4x16xf32> -> vector<4x16xf32>
    %c0_25 = arith.constant 0 : index
    %c0_26 = arith.constant 0 : index
    %35 = vector.load %arg7[%c0_25, %c0_26] : memref<4x1xf32, #tpu.memory_space<vmem>>, vector<4x1xf32>
    %36 = vector.broadcast %35 : vector<4x1xf32> to vector<4x16xf32>
    %37 = arith.addf %34, %36 : vector<4x16xf32>
    %38 = arith.negf %37 : vector<4x16xf32>
    %39 = math.exp %38 : vector<4x16xf32>
    %cst_27 = arith.constant 1.000000e+00 : f32
    %40 = vector.broadcast %cst_27 : f32 to vector<4x16xf32>
    %41 = arith.addf %40, %39 : vector<4x16xf32>
    %42 = arith.divf %40, %41 : vector<4x16xf32>
    %c0_28 = arith.constant 0 : index
    %c0_29 = arith.constant 0 : index
    %43 = vector.load %arg10[%c0_28, %c0_29] : memref<16x256xf32, #tpu.memory_space<vmem>>, vector<16x256xf32>
    %c0_30 = arith.constant 0 : index
    %c0_31 = arith.constant 0 : index
    %44 = vector.load %arg11[%c0_30, %c0_31] : memref<16x256xf32, #tpu.memory_space<vmem>>, vector<16x256xf32>
    %cst_32 = arith.constant dense<0.000000e+00> : vector<4x256xf32>
    %45 = tpu.matmul %32, %43, %cst_32 {dimension_numbers = #tpu.dot_dimension_numbers<[1], [0], [0], [1], [0, 0, 1, 1], [], []>} : vector<4x16xf32>, vector<16x256xf32>, vector<4x256xf32> -> vector<4x256xf32>
    %cst_33 = arith.constant dense<0.000000e+00> : vector<4x256xf32>
    %46 = tpu.matmul %42, %44, %cst_33 {dimension_numbers = #tpu.dot_dimension_numbers<[1], [0], [0], [1], [0, 0, 1, 1], [], []>} : vector<4x16xf32>, vector<16x256xf32>, vector<4x256xf32> -> vector<4x256xf32>
    %47 = arith.mulf %45, %46 : vector<4x256xf32>
    %48 = arith.mulf %3, %47 : vector<4x256xf32>
    %c0_34 = arith.constant 0 : index
    %c0_35 = arith.constant 0 : index
    %c0_36 = arith.constant 0 : index
    %49 = vector.load %arg12[%c0_34, %c0_35, %c0_36] : memref<1x4x256xf32, #tpu.memory_space<vmem>>, vector<1x4x256xf32>
    %50 = vector.shape_cast %49 : vector<1x4x256xf32> to vector<4x256xf32>
    %51 = vector.shape_cast %48 : vector<4x256xf32> to vector<1x4x256xf32>
    tpu.vector_store %arg12[%c0_34, %c0_35, %c0_36], %51 {strides = array<i32>} : memref<1x4x256xf32, #tpu.memory_space<vmem>>, vector<1x4x256xf32>,
    return
  }
  func.func @transform_0(%arg0: i32) -> (i32, i32, i32) {
    %c0_i32 = arith.constant 0 : i32
    %c0_i32_0 = arith.constant 0 : i32
    %c0_i32_1 = arith.constant 0 : i32
    return %arg0, %c0_i32, %c0_i32_0 : i32, i32, i32
  }
  func.func @transform_1(%arg0: i32) -> (i32, i32) {
    %c0_i32 = arith.constant 0 : i32
    %c0_i32_0 = arith.constant 0 : i32
    %c0_i32_1 = arith.constant 0 : i32
    return %c0_i32, %c0_i32_0 : i32, i32
  }
  func.func @transform_2(%arg0: i32) -> (i32, i32) {
    %c0_i32 = arith.constant 0 : i32
    %c0_i32_0 = arith.constant 0 : i32
    %c0_i32_1 = arith.constant 0 : i32
    return %c0_i32, %c0_i32_0 : i32, i32
  }
  func.func @transform_3(%arg0: i32) -> (i32, i32) {
    %c0_i32 = arith.constant 0 : i32
    %c0_i32_0 = arith.constant 0 : i32
    %c0_i32_1 = arith.constant 0 : i32
    return %c0_i32, %c0_i32_0 : i32, i32
  }
  func.func @transform_4(%arg0: i32) -> (i32, i32) {
    %c0_i32 = arith.constant 0 : i32
    %c0_i32_0 = arith.constant 0 : i32
    %c0_i32_1 = arith.constant 0 : i32
    return %c0_i32, %c0_i32_0 : i32, i32
  }
  func.func @transform_5(%arg0: i32) -> (i32, i32) {
    %c0_i32 = arith.constant 0 : i32
    %c0_i32_0 = arith.constant 0 : i32
    %c0_i32_1 = arith.constant 0 : i32
    return %c0_i32, %c0_i32_0 : i32, i32
  }
  func.func @transform_6(%arg0: i32) -> (i32, i32) {
    %c0_i32 = arith.constant 0 : i32
    %c0_i32_0 = arith.constant 0 : i32
    %c0_i32_1 = arith.constant 0 : i32
    return %c0_i32, %c0_i32_0 : i32, i32
  }
  func.func @transform_7(%arg0: i32) -> (i32, i32) {
    %c0_i32 = arith.constant 0 : i32
    %c0_i32_0 = arith.constant 0 : i32
    %c0_i32_1 = arith.constant 0 : i32
    return %c0_i32, %c0_i32_0 : i32, i32
  }
  func.func @transform_8(%arg0: i32) -> (i32, i32) {
    %c0_i32 = arith.constant 0 : i32
    %c0_i32_0 = arith.constant 0 : i32
    %c0_i32_1 = arith.constant 0 : i32
    return %c0_i32, %c0_i32_0 : i32, i32
  }
  func.func @transform_9(%arg0: i32) -> (i32, i32) {
    %c0_i32 = arith.constant 0 : i32
    %c0_i32_0 = arith.constant 0 : i32
    %c0_i32_1 = arith.constant 0 : i32
    return %c0_i32, %c0_i32_0 : i32, i32
  }
  func.func @transform_10(%arg0: i32) -> (i32, i32) {
    %c0_i32 = arith.constant 0 : i32
    %c0_i32_0 = arith.constant 0 : i32
    %c0_i32_1 = arith.constant 0 : i32
    return %c0_i32, %c0_i32_0 : i32, i32
  }
  func.func @transform_11(%arg0: i32) -> (i32, i32, i32) {
    %c0_i32 = arith.constant 0 : i32
    %c0_i32_0 = arith.constant 0 : i32
    %c0_i32_1 = arith.constant 0 : i32
    return %arg0, %c0_i32, %c0_i32_0 : i32, i32, i32
  }
}

</mosaic_0001>

<llo_original>
// kernel: tpu_custom_call.1
$region0: #{tpu_custom_call.1}
  #allocation0 [shape = 'u32[]', space=smem, size = 0x4, offset = 0x4, fixed_abs, tag = 'smem constant byte address 0x4 - core index']
  #allocation1 [shape = 'u32[72,128]{1,0:T(1,128)}', space=vmem, size = 0x9000, scoped, tag = 'internal scratch']
  %s0 = inlined_call_operand.vmem [shape: f32[2,4,256], index: 0, kind: input, shape index: {}]
  %s1 = inlined_call_operand.vmem [shape: f32[8,4], index: 1, kind: input, shape index: {}]
  %s2 = inlined_call_operand.vmem [shape: f32[8,1], index: 2, kind: input, shape index: {}]
  %s3 = inlined_call_operand.vmem [shape: f32[4,8], index: 3, kind: input, shape index: {}]
  %s4 = inlined_call_operand.vmem [shape: f32[4,1], index: 4, kind: input, shape index: {}]
  %s5 = inlined_call_operand.vmem [shape: f32[4,8], index: 5, kind: input, shape index: {}]
  %s6 = inlined_call_operand.vmem [shape: f32[4,1], index: 6, kind: input, shape index: {}]
  %s7 = inlined_call_operand.vmem [shape: f32[256,16], index: 7, kind: input, shape index: {}]
  %s8 = inlined_call_operand.vmem [shape: f32[256,16], index: 8, kind: input, shape index: {}]
  %s9 = inlined_call_operand.vmem [shape: f32[16,256], index: 9, kind: input, shape index: {}]
  %s10 = inlined_call_operand.vmem [shape: f32[16,256], index: 10, kind: input, shape index: {}]
  %s11 = inlined_call_operand.hbm [shape: f32[2,4,256], index: 11, kind: output, shape index: {}]
  %s12 = sld [smem:[#allocation0]]
  $region77: #{tpu_custom_call.1} parent=0
    _
  %s14 = ssub.s32 1, %s12
  %s15 = scalar_select 0, %s14, %s12
  $region1: #{tpu_custom_call.1} parent=0
    #allocation2 [shape = 'u8[8192]{0}', space=vmem, size = 0x2000, scoped, tag = 'output window, operand 0']
    #allocation3 [shape = 's32[2]{0}', space=sflag, size = 0x8, scoped, tag = 'scoped memory for tpu_custom_call.1']
    %16 = vsyncpa [#allocation3], 0
    %s17 = scalar_lea.sflag [#allocation3], 1
    %18 = vsyncpa %s17, 0
    loop: start=0, step=1, limit=4
    $region2: #{tpu_custom_call.1} parent=1 // loop_pre_header
      _
    $region3: #{tpu_custom_call.1} parent=1 // loop_header
      %s20 = sphi 0, %s24
      %p21 = scmp.ge.s32.totalorder %s20, 4
      %s30 = sphi 0, %s32
      %s33 = sphi 0, %s30
      %s34 = sphi 0, %s33
      %s50 = sphi 0, %s34
      %s54 = sphi 0, %s54
      %s56 = sphi 0, %s54
      %s57 = sphi 0, %s56
      %s71 = sphi 0, %s57
      %s75 = sphi 0, %s75
      %s77 = sphi 0, %s75
      %s78 = sphi 0, %s77
      %s92 = sphi 0, %s78
      %s96 = sphi 0, %s96
      %s98 = sphi 0, %s96
      %s99 = sphi 0, %s98
      %s113 = sphi 0, %s99
      %s117 = sphi 0, %s117
      %s119 = sphi 0, %s117
      %s120 = sphi 0, %s119
      %s134 = sphi 0, %s120
      %s138 = sphi 0, %s138
      %s140 = sphi 0, %s138
      %s141 = sphi 0, %s140
      %s155 = sphi 0, %s141
      %s159 = sphi 0, %s159
      %s161 = sphi 0, %s159
      %s162 = sphi 0, %s161
      %s176 = sphi 0, %s162
      %s180 = sphi 0, %s180
      %s182 = sphi 0, %s180
      %s183 = sphi 0, %s182
      %s197 = sphi 0, %s183
      %s201 = sphi 0, %s201
      %s203 = sphi 0, %s201
      %s204 = sphi 0, %s203
      %s218 = sphi 0, %s204
      %s222 = sphi 0, %s222
      %s224 = sphi 0, %s222
      %s225 = sphi 0, %s224
      %s239 = sphi 0, %s225
      %s243 = sphi 0, %s243
      %s245 = sphi 0, %s243
      %s246 = sphi 0, %s245
      %s260 = sphi 0, %s246
      %s266 = sphi 0, %s268
      %s269 = sphi 0, %s266
      %s270 = sphi 0, %s269
      %s286 = sphi 0, %s270
    $region4: #{tpu_custom_call.1} parent=1 // loop_header_branch
      %23 = sbr.rel (%p21) target = $region8
    $region5: #{tpu_custom_call.1} parent=1 // loop_body
      %s25 = ssub.s32 %s20, 1
      %s26 = ssub.s32 %s20, 2
      %s27 = sadd.s32 %s20, 1
      %s28 = ssub.s32 %s20, %s27
      %p29 = scmp.eq.s32.totalorder %s28, 0
      %s31 = sadd.s32 %s30, 1
      %s32 = scalar_select %p29, %s30, %s31
      %p35 = pneg %p29
      %p36 = scmp.eq.s32.totalorder %s20, 1
      %p37 = por %p35, %p36
      %p38 = scmp.ne.s32.totalorder %s30, %s33
      %p39 = scmp.eq.s32.totalorder %s20, 0
      %p40 = por %p38, %p39
      %p41 = scmp.ne.s32.totalorder %s30, %s33
      %p42 = scmp.eq.s32.totalorder %s25, 1
      %p43 = por %p41, %p42
      %p44 = scmp.ne.s32.totalorder %s33, %s34
      %p45 = scmp.eq.s32.totalorder %s25, 0
      %p46 = por %p44, %p45
      %p47 = scmp.ne.s32.totalorder %s33, %s34
      %p48 = scmp.eq.s32.totalorder %s26, 1
      %p49 = por %p47, %p48
      %p51 = scmp.ne.s32.totalorder %s34, %s50
      %p52 = scmp.eq.s32.totalorder %s26, 0
      %p53 = por %p51, %p52
      %s55 = sadd.s32 %s54, 1
      %p58 = scmp.eq.s32.totalorder %s20, 1
      %p59 = scmp.ne.s32.totalorder %s54, %s56
      %p60 = scmp.eq.s32.totalorder %s20, 0
      %p61 = por %p59, %p60
      %p62 = scmp.ne.s32.totalorder %s54, %s56
      %p63 = scmp.eq.s32.totalorder %s25, 1
      %p64 = por %p62, %p63
      %p65 = scmp.ne.s32.totalorder %s56, %s57
      %p66 = scmp.eq.s32.totalorder %s25, 0
      %p67 = por %p65, %p66
      %p68 = scmp.ne.s32.totalorder %s56, %s57
      %p69 = scmp.eq.s32.totalorder %s26, 1
      %p70 = por %p68, %p69
      %p72 = scmp.ne.s32.totalorder %s57, %s71
      %p73 = scmp.eq.s32.totalorder %s26, 0
      %p74 = por %p72, %p73
      %s76 = sadd.s32 %s75, 1
      %p79 = scmp.eq.s32.totalorder %s20, 1
      %p80 = scmp.ne.s32.totalorder %s75, %s77
      %p81 = scmp.eq.s32.totalorder %s20, 0
      %p82 = por %p80, %p81
      %p83 = scmp.ne.s32.totalorder %s75, %s77
      %p84 = scmp.eq.s32.totalorder %s25, 1
      %p85 = por %p83, %p84
      %p86 = scmp.ne.s32.totalorder %s77, %s78
      %p87 = scmp.eq.s32.totalorder %s25, 0
      %p88 = por %p86, %p87
      %p89 = scmp.ne.s32.totalorder %s77, %s78
      %p90 = scmp.eq.s32.totalorder %s26, 1
      %p91 = por %p89, %p90
      %p93 = scmp.ne.s32.totalorder %s78, %s92
      %p94 = scmp.eq.s32.totalorder %s26, 0
      %p95 = por %p93, %p94
      %s97 = sadd.s32 %s96, 1
      %p100 = scmp.eq.s32.totalorder %s20, 1
      %p101 = scmp.ne.s32.totalorder %s96, %s98
      %p102 = scmp.eq.s32.totalorder %s20, 0
      %p103 = por %p101, %p102
      %p104 = scmp.ne.s32.totalorder %s96, %s98
      %p105 = scmp.eq.s32.totalorder %s25, 1
      %p106 = por %p104, %p105
      %p107 = scmp.ne.s32.totalorder %s98, %s99
      %p108 = scmp.eq.s32.totalorder %s25, 0
      %p109 = por %p107, %p108
      %p110 = scmp.ne.s32.totalorder %s98, %s99
      %p111 = scmp.eq.s32.totalorder %s26, 1
      %p112 = por %p110, %p111
      %p114 = scmp.ne.s32.totalorder %s99, %s113
      %p115 = scmp.eq.s32.totalorder %s26, 0
      %p116 = por %p114, %p115
      %s118 = sadd.s32 %s117, 1
      %p121 = scmp.eq.s32.totalorder %s20, 1
      %p122 = scmp.ne.s32.totalorder %s117, %s119
      %p123 = scmp.eq.s32.totalorder %s20, 0
      %p124 = por %p122, %p123
      %p125 = scmp.ne.s32.totalorder %s117, %s119
      %p126 = scmp.eq.s32.totalorder %s25, 1
      %p127 = por %p125, %p126
      %p128 = scmp.ne.s32.totalorder %s119, %s120
      %p129 = scmp.eq.s32.totalorder %s25, 0
      %p130 = por %p128, %p129
      %p131 = scmp.ne.s32.totalorder %s119, %s120
      %p132 = scmp.eq.s32.totalorder %s26, 1
      %p133 = por %p131, %p132
      %p135 = scmp.ne.s32.totalorder %s120, %s134
      %p136 = scmp.eq.s32.totalorder %s26, 0
      %p137 = por %p135, %p136
      %s139 = sadd.s32 %s138, 1
      %p142 = scmp.eq.s32.totalorder %s20, 1
      %p143 = scmp.ne.s32.totalorder %s138, %s140
      %p144 = scmp.eq.s32.totalorder %s20, 0
      %p145 = por %p143, %p144
      %p146 = scmp.ne.s32.totalorder %s138, %s140
      %p147 = scmp.eq.s32.totalorder %s25, 1
      %p148 = por %p146, %p147
      %p149 = scmp.ne.s32.totalorder %s140, %s141
      %p150 = scmp.eq.s32.totalorder %s25, 0
      %p151 = por %p149, %p150
      %p152 = scmp.ne.s32.totalorder %s140, %s141
      %p153 = scmp.eq.s32.totalorder %s26, 1
      %p154 = por %p152, %p153
      %p156 = scmp.ne.s32.totalorder %s141, %s155
      %p157 = scmp.eq.s32.totalorder %s26, 0
      %p158 = por %p156, %p157
      %s160 = sadd.s32 %s159, 1
      %p163 = scmp.eq.s32.totalorder %s20, 1
      %p164 = scmp.ne.s32.totalorder %s159, %s161
      %p165 = scmp.eq.s32.totalorder %s20, 0
      %p166 = por %p164, %p165
      %p167 = scmp.ne.s32.totalorder %s159, %s161
      %p168 = scmp.eq.s32.totalorder %s25, 1
      %p169 = por %p167, %p168
      %p170 = scmp.ne.s32.totalorder %s161, %s162
      %p171 = scmp.eq.s32.totalorder %s25, 0
      %p172 = por %p170, %p171
      %p173 = scmp.ne.s32.totalorder %s161, %s162
      %p174 = scmp.eq.s32.totalorder %s26, 1
      %p175 = por %p173, %p174
      %p177 = scmp.ne.s32.totalorder %s162, %s176
      %p178 = scmp.eq.s32.totalorder %s26, 0
      %p179 = por %p177, %p178
      %s181 = sadd.s32 %s180, 1
      %p184 = scmp.eq.s32.totalorder %s20, 1
      %p185 = scmp.ne.s32.totalorder %s180, %s182
      %p186 = scmp.eq.s32.totalorder %s20, 0
      %p187 = por %p185, %p186
      %p188 = scmp.ne.s32.totalorder %s180, %s182
      %p189 = scmp.eq.s32.totalorder %s25, 1
      %p190 = por %p188, %p189
      %p191 = scmp.ne.s32.totalorder %s182, %s183
      %p192 = scmp.eq.s32.totalorder %s25, 0
      %p193 = por %p191, %p192
      %p194 = scmp.ne.s32.totalorder %s182, %s183
      %p195 = scmp.eq.s32.totalorder %s26, 1
      %p196 = por %p194, %p195
      %p198 = scmp.ne.s32.totalorder %s183, %s197
      %p199 = scmp.eq.s32.totalorder %s26, 0
      %p200 = por %p198, %p199
      %s202 = sadd.s32 %s201, 1
      %p205 = scmp.eq.s32.totalorder %s20, 1
      %p206 = scmp.ne.s32.totalorder %s201, %s203
      %p207 = scmp.eq.s32.totalorder %s20, 0
      %p208 = por %p206, %p207
      %p209 = scmp.ne.s32.totalorder %s201, %s203
      %p210 = scmp.eq.s32.totalorder %s25, 1
      %p211 = por %p209, %p210
      %p212 = scmp.ne.s32.totalorder %s203, %s204
      %p213 = scmp.eq.s32.totalorder %s25, 0
      %p214 = por %p212, %p213
      %p215 = scmp.ne.s32.totalorder %s203, %s204
      %p216 = scmp.eq.s32.totalorder %s26, 1
      %p217 = por %p215, %p216
      %p219 = scmp.ne.s32.totalorder %s204, %s218
      %p220 = scmp.eq.s32.totalorder %s26, 0
      %p221 = por %p219, %p220
      %s223 = sadd.s32 %s222, 1
      %p226 = scmp.eq.s32.totalorder %s20, 1
      %p227 = scmp.ne.s32.totalorder %s222, %s224
      %p228 = scmp.eq.s32.totalorder %s20, 0
      %p229 = por %p227, %p228
      %p230 = scmp.ne.s32.totalorder %s222, %s224
      %p231 = scmp.eq.s32.totalorder %s25, 1
      %p232 = por %p230, %p231
      %p233 = scmp.ne.s32.totalorder %s224, %s225
      %p234 = scmp.eq.s32.totalorder %s25, 0
      %p235 = por %p233, %p234
      %p236 = scmp.ne.s32.totalorder %s224, %s225
      %p237 = scmp.eq.s32.totalorder %s26, 1
      %p238 = por %p236, %p237
      %p240 = scmp.ne.s32.totalorder %s225, %s239
      %p241 = scmp.eq.s32.totalorder %s26, 0
      %p242 = por %p240, %p241
      %s244 = sadd.s32 %s243, 1
      %p247 = scmp.eq.s32.totalorder %s20, 1
      %p248 = scmp.ne.s32.totalorder %s243, %s245
      %p249 = scmp.eq.s32.totalorder %s20, 0
      %p250 = por %p248, %p249
      %p251 = scmp.ne.s32.totalorder %s243, %s245
      %p252 = scmp.eq.s32.totalorder %s25, 1
      %p253 = por %p251, %p252
      %p254 = scmp.ne.s32.totalorder %s245, %s246
      %p255 = scmp.eq.s32.totalorder %s25, 0
      %p256 = por %p254, %p255
      %p257 = scmp.ne.s32.totalorder %s245, %s246
      %p258 = scmp.eq.s32.totalorder %s26, 1
      %p259 = por %p257, %p258
      %p261 = scmp.ne.s32.totalorder %s246, %s260
      %p262 = scmp.eq.s32.totalorder %s26, 0
      %p263 = por %p261, %p262
      %s264 = ssub.s32 %s20, %s27
      %p265 = scmp.eq.s32.totalorder %s264, 0
      %s267 = sadd.s32 %s266, 1
      %s268 = scalar_select %p265, %s266, %s267
      %p271 = pneg %p265
      %p272 = scmp.eq.s32.totalorder %s20, 1
      %p273 = por %p271, %p272
      %p274 = scmp.ne.s32.totalorder %s266, %s269
      %p275 = scmp.eq.s32.totalorder %s20, 0
      %p276 = por %p274, %p275
      %p277 = scmp.ne.s32.totalorder %s266, %s269
      %p278 = scmp.eq.s32.totalorder %s25, 1
      %p279 = por %p277, %p278
      %p280 = scmp.ne.s32.totalorder %s269, %s270
      %p281 = scmp.eq.s32.totalorder %s25, 0
      %p282 = por %p280, %p281
      %p283 = scmp.ne.s32.totalorder %s269, %s270
      %p284 = scmp.eq.s32.totalorder %s26, 1
      %p285 = por %p283, %p284
      %p287 = scmp.ne.s32.totalorder %s270, %s286
      %p288 = scmp.eq.s32.totalorder %s26, 0
      %p289 = por %p287, %p288
      %p290 = scmp.le.s32.totalorder 1, %s20
      %p291 = scmp.lt.s32.totalorder %s20, 3
      %p292 = pnand %p290, %p291
      %p293 = pneg %p292
      // Predicated region
      $region9: #{tpu_custom_call.1} parent=5 // pred_check
        _
      $region10: #{tpu_custom_call.1} parent=5 // pred_check_branch
        %295 = sbr.rel (%p292) target = $region12
      $region11: #{tpu_custom_call.1} parent=5 // pred_region
        %s296 = ssub.s32 %s20, 1
        // Predicated region
        $region13: #{tpu_custom_call.1} parent=11 // pred_check
          %p297 = pneg %p67
        $region14: #{tpu_custom_call.1} parent=11 // pred_check_branch
          %299 = sbr.rel (%p297) target = $region16
        $region15: #{tpu_custom_call.1} parent=11 // pred_region
          _
        $region16: #{tpu_custom_call.1} parent=11 // pred_fallthru
          _
        // Predicated region
        $region17: #{tpu_custom_call.1} parent=11 // pred_check
          %p300 = pneg %p88
        $region18: #{tpu_custom_call.1} parent=11 // pred_check_branch
          %302 = sbr.rel (%p300) target = $region20
        $region19: #{tpu_custom_call.1} parent=11 // pred_region
          _
        $region20: #{tpu_custom_call.1} parent=11 // pred_fallthru
          _
        // Predicated region
        $region21: #{tpu_custom_call.1} parent=11 // pred_check
          %p303 = pneg %p109
        $region22: #{tpu_custom_call.1} parent=11 // pred_check_branch
          %305 = sbr.rel (%p303) target = $region24
        $region23: #{tpu_custom_call.1} parent=11 // pred_region
          _
        $region24: #{tpu_custom_call.1} parent=11 // pred_fallthru
          _
        // Predicated region
        $region25: #{tpu_custom_call.1} parent=11 // pred_check
          %p306 = pneg %p130
        $region26: #{tpu_custom_call.1} parent=11 // pred_check_branch
          %308 = sbr.rel (%p306) target = $region28
        $region27: #{tpu_custom_call.1} parent=11 // pred_region
          _
        $region28: #{tpu_custom_call.1} parent=11 // pred_fallthru
          _
        // Predicated region
        $region29: #{tpu_custom_call.1} parent=11 // pred_check
          %p309 = pneg %p151
        $region30: #{tpu_custom_call.1} parent=11 // pred_check_branch
          %311 = sbr.rel (%p309) target = $region32
        $region31: #{tpu_custom_call.1} parent=11 // pred_region
          _
        $region32: #{tpu_custom_call.1} parent=11 // pred_fallthru
          _
        // Predicated region
        $region33: #{tpu_custom_call.1} parent=11 // pred_check
          %p312 = pneg %p172
        $region34: #{tpu_custom_call.1} parent=11 // pred_check_branch
          %314 = sbr.rel (%p312) target = $region36
        $region35: #{tpu_custom_call.1} parent=11 // pred_region
          _
        $region36: #{tpu_custom_call.1} parent=11 // pred_fallthru
          _
        // Predicated region
        $region37: #{tpu_custom_call.1} parent=11 // pred_check
          %p315 = pneg %p193
        $region38: #{tpu_custom_call.1} parent=11 // pred_check_branch
          %317 = sbr.rel (%p315) target = $region40
        $region39: #{tpu_custom_call.1} parent=11 // pred_region
          _
        $region40: #{tpu_custom_call.1} parent=11 // pred_fallthru
          _
        // Predicated region
        $region41: #{tpu_custom_call.1} parent=11 // pred_check
          %p318 = pneg %p214
        $region42: #{tpu_custom_call.1} parent=11 // pred_check_branch
          %320 = sbr.rel (%p318) target = $region44
        $region43: #{tpu_custom_call.1} parent=11 // pred_region
          _
        $region44: #{tpu_custom_call.1} parent=11 // pred_fallthru
          _
        // Predicated region
        $region45: #{tpu_custom_call.1} parent=11 // pred_check
          %p321 = pneg %p235
        $region46: #{tpu_custom_call.1} parent=11 // pred_check_branch
          %323 = sbr.rel (%p321) target = $region48
        $region47: #{tpu_custom_call.1} parent=11 // pred_region
          _
        $region48: #{tpu_custom_call.1} parent=11 // pred_fallthru
          _
        // Predicated region
        $region49: #{tpu_custom_call.1} parent=11 // pred_check
          %p324 = pneg %p256
        $region50: #{tpu_custom_call.1} parent=11 // pred_check_branch
          %326 = sbr.rel (%p324) target = $region52
        $region51: #{tpu_custom_call.1} parent=11 // pred_region
          _
        $region52: #{tpu_custom_call.1} parent=11 // pred_fallthru
          _
      $region12: #{tpu_custom_call.1} parent=5 // pred_fallthru
        _
      %p327 = scmp.lt.s32.totalorder %s20, 2
      // Predicated region
      $region53: #{tpu_custom_call.1} parent=5 // pred_check
        %p328 = pneg %p327
      $region54: #{tpu_custom_call.1} parent=5 // pred_check_branch
        %330 = sbr.rel (%p328) target = $region56
      $region55: #{tpu_custom_call.1} parent=5 // pred_region
        // Predicated region
        $region57: #{tpu_custom_call.1} parent=55 // pred_check
          %p331 = pneg %p40
        $region58: #{tpu_custom_call.1} parent=55 // pred_check_branch
          %333 = sbr.rel (%p331) target = $region60
        $region59: #{tpu_custom_call.1} parent=55 // pred_region
          %p334 = scmp.lt.s32.totalorder %s20, 1
          %s335 = scalar_select %p334, %s20, 1
          %s336 = smul.addr %s335, 2
          %s337 = smul.addr %s336, 4
          %s338 = scalar_lea.vmem %s0, %s337
        $region60: #{tpu_custom_call.1} parent=55 // pred_fallthru
          _
      $region56: #{tpu_custom_call.1} parent=5 // pred_fallthru
        _
      %p339 = scmp.le.s32.totalorder 1, %s20
      %p340 = scmp.lt.s32.totalorder %s20, 3
      %p341 = pnand %p339, %p340
      %p342 = pneg %p341
      // Predicated region
      $region61: #{tpu_custom_call.1} parent=5 // pred_check
        _
      $region62: #{tpu_custom_call.1} parent=5 // pred_check_branch
        %344 = sbr.rel (%p341) target = $region64
      $region63: #{tpu_custom_call.1} parent=5 // pred_region
        %s345 = ssub.s32 %s20, 1
        %p346 = scmp.lt.s32.totalorder %s25, 1
        %s347 = scalar_select %p346, %s25, 1
        %s348 = smul.addr %s347, 2
        %s349 = smul.addr %s348, 4
        %s350 = scalar_lea.vmem %s0, %s349
        %p351 = pneg %p46
        %p352 = pneg %p43
        %p353 = pneg %p67
        %p354 = pneg %p64
        %p355 = pneg %p88
        %p356 = pneg %p85
        %p357 = pneg %p109
        %p358 = pneg %p106
        %p359 = pneg %p130
        %p360 = pneg %p127
        %p361 = pneg %p151
        %p362 = pneg %p148
        %p363 = pneg %p172
        %p364 = pneg %p169
        %p365 = pneg %p193
        %p366 = pneg %p190
        %p367 = pneg %p214
        %p368 = pneg %p211
        %p369 = pneg %p235
        %p370 = pneg %p232
        %p371 = pneg %p256
        %p372 = pneg %p253
        %p373 = pneg %p282
        %p374 = pneg %p279
        %s375 = sand.u32 %s269, 1
        %s376 = scalar_lea.sflag [#allocation3], %s375
        %s377 = sand.u32 %s269, 1
        %s378 = smul.addr %s377, 8
        %s379 = scalar_lea.vmem [#allocation2], %s378
        %p380 = scmp.lt.s32.totalorder %s25, 1
        %s381 = scalar_select %p380, %s25, 1
        %s382 = smul.addr %s381, 2
        %s383 = smul.addr %s382, 4
        %s384 = scalar_lea.vmem %s0, %s383
        %v385 = vld [vmem:[%s7] sm:$0xff]
        %v386 = vld [vmem:[%s7 + $0x8] sm:$0xff]
        %v387 = vld [vmem:[%s7 + $0x10] sm:$0xff]
        %v388 = vld [vmem:[%s7 + $0x18] sm:$0xff]
        %v389 = vld [vmem:[%s7 + $0x20] sm:$0xff]
        %v390 = vld [vmem:[%s7 + $0x28] sm:$0xff]
        %v391 = vld [vmem:[%s7 + $0x30] sm:$0xff]
        %v392 = vld [vmem:[%s7 + $0x38] sm:$0xff]
        %v393 = vld [vmem:[%s7 + $0x40] sm:$0xff]
        %v394 = vld [vmem:[%s7 + $0x48] sm:$0xff]
        %v395 = vld [vmem:[%s7 + $0x50] sm:$0xff]
        %v396 = vld [vmem:[%s7 + $0x58] sm:$0xff]
        %v397 = vld [vmem:[%s7 + $0x60] sm:$0xff]
        %v398 = vld [vmem:[%s7 + $0x68] sm:$0xff]
        %v399 = vld [vmem:[%s7 + $0x70] sm:$0xff]
        %v400 = vld [vmem:[%s7 + $0x78] sm:$0xff]
        %v401 = vld [vmem:[%s7 + $0x80] sm:$0xff]
        %v402 = vld [vmem:[%s7 + $0x88] sm:$0xff]
        %v403 = vld [vmem:[%s7 + $0x90] sm:$0xff]
        %v404 = vld [vmem:[%s7 + $0x98] sm:$0xff]
        %v405 = vld [vmem:[%s7 + $0xa0] sm:$0xff]
        %v406 = vld [vmem:[%s7 + $0xa8] sm:$0xff]
        %v407 = vld [vmem:[%s7 + $0xb0] sm:$0xff]
        %v408 = vld [vmem:[%s7 + $0xb8] sm:$0xff]
        %v409 = vld [vmem:[%s7 + $0xc0] sm:$0xff]
        %v410 = vld [vmem:[%s7 + $0xc8] sm:$0xff]
        %v411 = vld [vmem:[%s7 + $0xd0] sm:$0xff]
        %v412 = vld [vmem:[%s7 + $0xd8] sm:$0xff]
        %v413 = vld [vmem:[%s7 + $0xe0] sm:$0xff]
        %v414 = vld [vmem:[%s7 + $0xe8] sm:$0xff]
        %v415 = vld [vmem:[%s7 + $0xf0] sm:$0xff]
        %v416 = vld [vmem:[%s7 + $0xf8] sm:$0xff]
        %v417 = vld [vmem:[%s8] sm:$0xff]
        %v418 = vld [vmem:[%s8 + $0x8] sm:$0xff]
        %v419 = vld [vmem:[%s8 + $0x10] sm:$0xff]
        %v420 = vld [vmem:[%s8 + $0x18] sm:$0xff]
        %v421 = vld [vmem:[%s8 + $0x20] sm:$0xff]
        %v422 = vld [vmem:[%s8 + $0x28] sm:$0xff]
        %v423 = vld [vmem:[%s8 + $0x30] sm:$0xff]
        %v424 = vld [vmem:[%s8 + $0x38] sm:$0xff]
        %v425 = vld [vmem:[%s8 + $0x40] sm:$0xff]
        %v426 = vld [vmem:[%s8 + $0x48] sm:$0xff]
        %v427 = vld [vmem:[%s8 + $0x50] sm:$0xff]
        %v428 = vld [vmem:[%s8 + $0x58] sm:$0xff]
        %v429 = vld [vmem:[%s8 + $0x60] sm:$0xff]
        %v430 = vld [vmem:[%s8 + $0x68] sm:$0xff]
        %v431 = vld [vmem:[%s8 + $0x70] sm:$0xff]
        %v432 = vld [vmem:[%s8 + $0x78] sm:$0xff]
        %v433 = vld [vmem:[%s8 + $0x80] sm:$0xff]
        %v434 = vld [vmem:[%s8 + $0x88] sm:$0xff]
        %v435 = vld [vmem:[%s8 + $0x90] sm:$0xff]
        %v436 = vld [vmem:[%s8 + $0x98] sm:$0xff]
        %v437 = vld [vmem:[%s8 + $0xa0] sm:$0xff]
        %v438 = vld [vmem:[%s8 + $0xa8] sm:$0xff]
        %v439 = vld [vmem:[%s8 + $0xb0] sm:$0xff]
        %v440 = vld [vmem:[%s8 + $0xb8] sm:$0xff]
        %v441 = vld [vmem:[%s8 + $0xc0] sm:$0xff]
        %v442 = vld [vmem:[%s8 + $0xc8] sm:$0xff]
        %v443 = vld [vmem:[%s8 + $0xd0] sm:$0xff]
        %v444 = vld [vmem:[%s8 + $0xd8] sm:$0xff]
        %v445 = vld [vmem:[%s8 + $0xe0] sm:$0xff]
        %v446 = vld [vmem:[%s8 + $0xe8] sm:$0xff]
        %v447 = vld [vmem:[%s8 + $0xf0] sm:$0xff]
        %v448 = vld [vmem:[%s8 + $0xf8] sm:$0xff]
        %v449 = vld [vmem:[%s384] sm:$0xff]
        %451 = vst [vmem:[#allocation1] ss:$2 sm:$0xff] %v449
        %v452 = vld.sshfl [vmem:[#allocation1] sm:$0xff pattern:$0x75316420]
        %v453 = vld.sshfl [vmem:[#allocation1 + $0x8] sm:$0xff pattern:$0x75316420]
        %456 = vmatpush.msra.mxu0 %v400
        %457 = vmatpush.msra.mxu0 %v399
        %458 = vmatpush.msra.mxu0 %v398
        %459 = vmatpush.msra.mxu0 %v397
        %460 = vmatpush.msra.mxu0 %v396
        %461 = vmatpush.msra.mxu0 %v395
        %462 = vmatpush.msra.mxu0 %v394
        %463 = vmatpush.msra.mxu0 %v393
        %464 = vmatpush.msra.mxu0 %v392
        %465 = vmatpush.msra.mxu0 %v391
        %466 = vmatpush.msra.mxu0 %v390
        %467 = vmatpush.msra.mxu0 %v389
        %468 = vmatpush.msra.mxu0 %v388
        %469 = vmatpush.msra.mxu0 %v387
        %470 = vmatpush.msra.mxu0 %v386
        %471 = vmatpush.msra.mxu0 %v385
        %472 = vmatmul.f32.gmra.mxu0 %v452
        %v473 = vpop.f32.mrf.mxu0
        %v474 = vadd.f32 0.0, %v473
        %475 = vdwg.mxu0
        %476 = vmatpush.msra.mxu0 %v416
        %477 = vmatpush.msra.mxu0 %v415
        %478 = vmatpush.msra.mxu0 %v414
        %479 = vmatpush.msra.mxu0 %v413
        %480 = vmatpush.msra.mxu0 %v412
        %481 = vmatpush.msra.mxu0 %v411
        %482 = vmatpush.msra.mxu0 %v410
        %483 = vmatpush.msra.mxu0 %v409
        %484 = vmatpush.msra.mxu0 %v408
        %485 = vmatpush.msra.mxu0 %v407
        %486 = vmatpush.msra.mxu0 %v406
        %487 = vmatpush.msra.mxu0 %v405
        %488 = vmatpush.msra.mxu0 %v404
        %489 = vmatpush.msra.mxu0 %v403
        %490 = vmatpush.msra.mxu0 %v402
        %491 = vmatpush.msra.mxu0 %v401
        %492 = vmatmul.f32.gmra.mxu0 %v453
        %v493 = vpop.f32.mrf.mxu0
        %v494 = vadd.f32 %v474, %v493
        %495 = vdwg.mxu0
        %496 = vst [vmem:[#allocation1] ss:$2 sm:$0xff] %v449
        %v497 = vld.sshfl [vmem:[#allocation1] sm:$0xff pattern:$0x75316420]
        %v498 = vld.sshfl [vmem:[#allocation1 + $0x8] sm:$0xff pattern:$0x75316420]
        %501 = vmatpush.msra.mxu0 %v432
        %502 = vmatpush.msra.mxu0 %v431
        %503 = vmatpush.msra.mxu0 %v430
        %504 = vmatpush.msra.mxu0 %v429
        %505 = vmatpush.msra.mxu0 %v428
        %506 = vmatpush.msra.mxu0 %v427
        %507 = vmatpush.msra.mxu0 %v426
        %508 = vmatpush.msra.mxu0 %v425
        %509 = vmatpush.msra.mxu0 %v424
        %510 = vmatpush.msra.mxu0 %v423
        %511 = vmatpush.msra.mxu0 %v422
        %512 = vmatpush.msra.mxu0 %v421
        %513 = vmatpush.msra.mxu0 %v420
        %514 = vmatpush.msra.mxu0 %v419
        %515 = vmatpush.msra.mxu0 %v418
        %516 = vmatpush.msra.mxu0 %v417
        %517 = vmatmul.f32.gmra.mxu0 %v497
        %v518 = vpop.f32.mrf.mxu0
        %v519 = vadd.f32 0.0, %v518
        %520 = vdwg.mxu0
        %521 = vmatpush.msra.mxu0 %v448
        %522 = vmatpush.msra.mxu0 %v447
        %523 = vmatpush.msra.mxu0 %v446
        %524 = vmatpush.msra.mxu0 %v445
        %525 = vmatpush.msra.mxu0 %v444
        %526 = vmatpush.msra.mxu0 %v443
        %527 = vmatpush.msra.mxu0 %v442
        %528 = vmatpush.msra.mxu0 %v441
        %529 = vmatpush.msra.mxu0 %v440
        %530 = vmatpush.msra.mxu0 %v439
        %531 = vmatpush.msra.mxu0 %v438
        %532 = vmatpush.msra.mxu0 %v437
        %533 = vmatpush.msra.mxu0 %v436
        %534 = vmatpush.msra.mxu0 %v435
        %535 = vmatpush.msra.mxu0 %v434
        %536 = vmatpush.msra.mxu0 %v433
        %537 = vmatmul.f32.gmra.mxu0 %v498
        %v538 = vpop.f32.mrf.mxu0
        %v539 = vadd.f32 %v519, %v538
        %540 = vdwg.mxu0
        %542 = vrot.lane.b32.xlu0 %v539, 16
        %v543 = vpop.permute.xlu0 %542
        %vm545 = vcmask 130048
        %v546 = vsel %vm545, %v494, %v543
        %v547 = vld [vmem:[%s1] sm:$0xff]
        %v548 = vld [vmem:[%s2] sm:$0xff]
        %550 = vset.pattern.permute.xlu0 0
        %551 = vperm.xlu0 %550, %v548
        %v552 = vpop.permute.xlu0 %551
        %vm554 = vcmask 31744
        %v556 = vsel %vm554, %v547, 0
        %vm558 = vcmask 1043456
        %v560 = vsel %vm558, %v546, 0
        %562 = vmatpush.msra.mxu0 0.0
        %563 = vmatpush.msra.mxu0 0.0
        %564 = vmatpush.msra.mxu0 0.0
        %565 = vmatpush.msra.mxu0 0.0
        %566 = vmatpush.msra.mxu0 0.0
        %567 = vmatpush.msra.mxu0 0.0
        %568 = vmatpush.msra.mxu0 0.0
        %569 = vmatpush.msra.mxu0 0.0
        %570 = vmatpush.msra.mxu0 0.0
        %571 = vmatpush.msra.mxu0 0.0
        %572 = vmatpush.msra.mxu0 0.0
        %573 = vmatpush.msra.mxu0 0.0
        %574 = vmatpush.msra.mxu0 0.0
        %575 = vmatpush.msra.mxu0 0.0
        %576 = vmatpush.msra.mxu0 0.0
        %577 = vmatpush.msra.mxu0 %v560
        %578 = vmatmul.f32.gmra.mxu0 %v556
        %v579 = vpop.f32.mrf.mxu0
        %v580 = vadd.f32 %v552, %v579
        %581 = vdwg.mxu0
        %v582 = vadd.f32 %v580, 3.0
        %v583 = vmax.f32 %v582, 0.0
        %v584 = vmin.f32 %v583, 6.0
        %v585 = vmul.f32 %v580, %v584
        %v586 = vmul.f32 %v585, 0.16666667
        %v587 = vld [vmem:[%s3] sm:$0xf]
        %v588 = vld [vmem:[%s4] sm:$0xf]
        %590 = vset.pattern.permute.xlu0 0
        %591 = vperm.xlu0 %590, %v588
        %v592 = vpop.permute.xlu0 %591
        %vm594 = vcmask 64512
        %v596 = vsel %vm594, %v587, 0
        %598 = vmatpush.msra.mxu0 0.0
        %599 = vmatpush.msra.mxu0 0.0
        %600 = vmatpush.msra.mxu0 0.0
        %601 = vmatpush.msra.mxu0 0.0
        %602 = vmatpush.msra.mxu0 0.0
        %603 = vmatpush.msra.mxu0 0.0
        %604 = vmatpush.msra.mxu0 0.0
        %605 = vmatpush.msra.mxu0 0.0
        %606 = vmatpush.msra.mxu0 0.0
        %607 = vmatpush.msra.mxu0 0.0
        %608 = vmatpush.msra.mxu0 0.0
        %609 = vmatpush.msra.mxu0 0.0
        %610 = vmatpush.msra.mxu0 0.0
        %611 = vmatpush.msra.mxu0 0.0
        %612 = vmatpush.msra.mxu0 0.0
        %613 = vmatpush.msra.mxu0 %v586
        %614 = vmatmul.f32.gmra.mxu0 %v596
        %v615 = vpop.f32.mrf.mxu0
        %v616 = vadd.f32 %v592, %v615
        %617 = vdwg.mxu0
        %v618 = vxor.u32 %v616, 2147483648
        %v619 = vmul.f32 %v618, 1.442695
        %v620 = vpow.pop %v619
        %v621 = vadd.f32 %v620, 1.0
        %v622 = vrcp.pop %v621
        %v623 = vmul.f32 %v621, %v622
        %v624 = vsub.f32 1.0, %v623
        %v625 = vmul.f32 %v622, %v624
        %v626 = vadd.f32 %v622, %v625
        %vm627 = vweird.f32 %v621
        %vm628 = vweird.f32 %v622
        %vm629 = vmor %vm627, %vm628
        %v630 = vsel %vm629, %v622, %v626
        %v631 = vand.u32 2147483647, %v621
        %vm632 = vcmp.eq.f32.partialorder %v631, 8.507059e+37
        %v633 = vand.u32 %v621, 2147483648
        %v634 = vor.u32 1.1754944e-38, %v633
        %v635 = vsel %vm632, %v634, %v630
        %v636 = vmul.f32 1.0, %v635
        %v637 = vld [vmem:[%s5] sm:$0xf]
        %v638 = vld [vmem:[%s6] sm:$0xf]
        %640 = vset.pattern.permute.xlu0 0
        %641 = vperm.xlu0 %640, %v638
        %v642 = vpop.permute.xlu0 %641
        %645 = vrot.lane.b32.xlu0 %v586, 112
        %v646 = vpop.permute.xlu0 %645
        %v649 = vsel %vm594, %v637, 0
        %651 = vmatpush.msra.mxu0 0.0
        %652 = vmatpush.msra.mxu0 0.0
        %653 = vmatpush.msra.mxu0 0.0
        %654 = vmatpush.msra.mxu0 0.0
        %655 = vmatpush.msra.mxu0 0.0
        %656 = vmatpush.msra.mxu0 0.0
        %657 = vmatpush.msra.mxu0 0.0
        %658 = vmatpush.msra.mxu0 0.0
        %659 = vmatpush.msra.mxu0 0.0
        %660 = vmatpush.msra.mxu0 0.0
        %661 = vmatpush.msra.mxu0 0.0
        %662 = vmatpush.msra.mxu0 0.0
        %663 = vmatpush.msra.mxu0 0.0
        %664 = vmatpush.msra.mxu0 0.0
        %665 = vmatpush.msra.mxu0 0.0
        %666 = vmatpush.msra.mxu0 %v646
        %667 = vmatmul.f32.gmra.mxu0 %v649
        %v668 = vpop.f32.mrf.mxu0
        %v669 = vadd.f32 %v642, %v668
        %670 = vdwg.mxu0
        %v671 = vxor.u32 %v669, 2147483648
        %v672 = vmul.f32 %v671, 1.442695
        %v673 = vpow.pop %v672
        %v674 = vadd.f32 %v673, 1.0
        %v675 = vrcp.pop %v674
        %v676 = vmul.f32 %v674, %v675
        %v677 = vsub.f32 1.0, %v676
        %v678 = vmul.f32 %v675, %v677
        %v679 = vadd.f32 %v675, %v678
        %vm680 = vweird.f32 %v674
        %vm681 = vweird.f32 %v675
        %vm682 = vmor %vm680, %vm681
        %v683 = vsel %vm682, %v675, %v679
        %v684 = vand.u32 2147483647, %v674
        %vm685 = vcmp.eq.f32.partialorder %v684, 8.507059e+37
        %v686 = vand.u32 %v674, 2147483648
        %v687 = vor.u32 1.1754944e-38, %v686
        %v688 = vsel %vm685, %v687, %v683
        %v689 = vmul.f32 1.0, %v688
        %v690 = vld [vmem:[%s9] sm:$0xff]
        %v691 = vld [vmem:[%s9 + $0x8] sm:$0xff]
        %v692 = vld [vmem:[%s9 + $0x10] sm:$0xff]
        %v693 = vld [vmem:[%s9 + $0x18] sm:$0xff]
        %v694 = vld [vmem:[%s10] sm:$0xff]
        %v695 = vld [vmem:[%s10 + $0x8] sm:$0xff]
        %v696 = vld [vmem:[%s10 + $0x10] sm:$0xff]
        %v697 = vld [vmem:[%s10 + $0x18] sm:$0xff]
        %v699 = vsel %vm545, %v636, 0
        %701 = vmatpush.msra.mxu0 0.0
        %702 = vmatpush.msra.mxu0 0.0
        %703 = vmatpush.msra.mxu0 0.0
        %704 = vmatpush.msra.mxu0 0.0
        %705 = vmatpush.msra.mxu0 0.0
        %706 = vmatpush.msra.mxu0 0.0
        %707 = vmatpush.msra.mxu0 0.0
        %708 = vmatpush.msra.mxu0 0.0
        %709 = vmatpush.msra.mxu0 0.0
        %710 = vmatpush.msra.mxu0 0.0
        %711 = vmatpush.msra.mxu0 0.0
        %712 = vmatpush.msra.mxu0 0.0
        %713 = vmatpush.msra.mxu0 0.0
        %714 = vmatpush.msra.mxu0 0.0
        %715 = vmatpush.msra.mxu0 %v692
        %716 = vmatpush.msra.mxu0 %v690
        %717 = vmatmul.f32.gmra.mxu0 %v699
        %v718 = vpop.f32.mrf.mxu0
        %v719 = vadd.f32 0.0, %v718
        %720 = vdwg.mxu0
        %721 = vmatpush.msra.mxu0 0.0
        %722 = vmatpush.msra.mxu0 0.0
        %723 = vmatpush.msra.mxu0 0.0
        %724 = vmatpush.msra.mxu0 0.0
        %725 = vmatpush.msra.mxu0 0.0
        %726 = vmatpush.msra.mxu0 0.0
        %727 = vmatpush.msra.mxu0 0.0
        %728 = vmatpush.msra.mxu0 0.0
        %729 = vmatpush.msra.mxu0 0.0
        %730 = vmatpush.msra.mxu0 0.0
        %731 = vmatpush.msra.mxu0 0.0
        %732 = vmatpush.msra.mxu0 0.0
        %733 = vmatpush.msra.mxu0 0.0
        %734 = vmatpush.msra.mxu0 0.0
        %735 = vmatpush.msra.mxu0 %v693
        %736 = vmatpush.msra.mxu0 %v691
        %737 = vmatmul.f32.gmra.mxu0 %v699
        %v738 = vpop.f32.mrf.mxu0
        %v739 = vadd.f32 0.0, %v738
        %740 = vdwg.mxu0
        %v742 = vsel %vm545, %v689, 0
        %744 = vmatpush.msra.mxu0 0.0
        %745 = vmatpush.msra.mxu0 0.0
        %746 = vmatpush.msra.mxu0 0.0
        %747 = vmatpush.msra.mxu0 0.0
        %748 = vmatpush.msra.mxu0 0.0
        %749 = vmatpush.msra.mxu0 0.0
        %750 = vmatpush.msra.mxu0 0.0
        %751 = vmatpush.msra.mxu0 0.0
        %752 = vmatpush.msra.mxu0 0.0
        %753 = vmatpush.msra.mxu0 0.0
        %754 = vmatpush.msra.mxu0 0.0
        %755 = vmatpush.msra.mxu0 0.0
        %756 = vmatpush.msra.mxu0 0.0
        %757 = vmatpush.msra.mxu0 0.0
        %758 = vmatpush.msra.mxu0 %v696
        %759 = vmatpush.msra.mxu0 %v694
        %760 = vmatmul.f32.gmra.mxu0 %v742
        %v761 = vpop.f32.mrf.mxu0
        %v762 = vadd.f32 0.0, %v761
        %763 = vdwg.mxu0
        %764 = vmatpush.msra.mxu0 0.0
        %765 = vmatpush.msra.mxu0 0.0
        %766 = vmatpush.msra.mxu0 0.0
        %767 = vmatpush.msra.mxu0 0.0
        %768 = vmatpush.msra.mxu0 0.0
        %769 = vmatpush.msra.mxu0 0.0
        %770 = vmatpush.msra.mxu0 0.0
        %771 = vmatpush.msra.mxu0 0.0
        %772 = vmatpush.msra.mxu0 0.0
        %773 = vmatpush.msra.mxu0 0.0
        %774 = vmatpush.msra.mxu0 0.0
        %775 = vmatpush.msra.mxu0 0.0
        %776 = vmatpush.msra.mxu0 0.0
        %777 = vmatpush.msra.mxu0 0.0
        %778 = vmatpush.msra.mxu0 %v697
        %779 = vmatpush.msra.mxu0 %v695
        %780 = vmatmul.f32.gmra.mxu0 %v742
        %v781 = vpop.f32.mrf.mxu0
        %v782 = vadd.f32 0.0, %v781
        %783 = vdwg.mxu0
        %v784 = vmul.f32 %v719, %v762
        %v785 = vmul.f32 %v739, %v782
        %v788 = vrot.slane %v785, 4
        %v789 = vsel %vm558, %v784, %v788
        %v791 = vmul.f32 %v449, %v789
        %792 = vst [vmem:[%s379] sm:$0xff] %v791
        %s793 = sand.u32 %s269, 1
        %s794 = scalar_lea.sflag [#allocation3], %s793
        %s795 = sand.u32 %s269, 1
        %s796 = smul.addr %s795, 8
        %s797 = scalar_lea.vmem [#allocation2], %s796
        // Predicated region
        $region65: #{tpu_custom_call.1} parent=63 // pred_check
          %p798 = pneg %p279
        $region66: #{tpu_custom_call.1} parent=63 // pred_check_branch
          %800 = sbr.rel (%p798) target = $region68
        $region67: #{tpu_custom_call.1} parent=63 // pred_region
          %802 = vsyncadd %s794, 0
          %s803 = smul.addr %s25, 2
          %s804 = smul.addr %s803, 4
          %s805 = scalar_lea.hbm %s11, %s804
          %s807 = sshll.u32 %s797, 4
          %s808 = int_to_ptr.vmem [resolvable:$true] %s807
          %s809 = sshll.u32 %s805, 4
          %s810 = int_to_ptr.hbm [resolvable:$true] %s809
          %812 = dma.vmem_to_hbm [thread:$0]  %s808, 128, %s810, %s794
        $region68: #{tpu_custom_call.1} parent=63 // pred_fallthru
          _
      $region64: #{tpu_custom_call.1} parent=5 // pred_fallthru
        _
      %p813 = scmp.le.s32.totalorder 2, %s20
      // Predicated region
      $region69: #{tpu_custom_call.1} parent=5 // pred_check
        %p814 = pneg %p813
      $region70: #{tpu_custom_call.1} parent=5 // pred_check_branch
        %816 = sbr.rel (%p814) target = $region72
      $region71: #{tpu_custom_call.1} parent=5 // pred_region
        %s817 = ssub.s32 %s20, 2
        // Predicated region
        $region73: #{tpu_custom_call.1} parent=71 // pred_check
          %p818 = pneg %p285
        $region74: #{tpu_custom_call.1} parent=71 // pred_check_branch
          %820 = sbr.rel (%p818) target = $region76
        $region75: #{tpu_custom_call.1} parent=71 // pred_region
          %s821 = sand.u32 %s270, 1
          %s822 = scalar_lea.sflag [#allocation3], %s821
          %s823 = sand.u32 %s270, 1
          %s824 = smul.addr %s823, 8
          %s825 = scalar_lea.vmem [#allocation2], %s824
          %827 = dma.done %s822, 128
        $region76: #{tpu_custom_call.1} parent=71 // pred_fallthru
          _
      $region72: #{tpu_custom_call.1} parent=5 // pred_fallthru
        _
    $region6: #{tpu_custom_call.1} parent=1 // loop_footer
      %s24 = sadd.s32 1, %s20
    $region7: #{tpu_custom_call.1} parent=1 // loop_footer_branch
      %19 = sbr.rel target = $region3
    $region8: #{tpu_custom_call.1} parent=1 // loop_exit
      _
    %828 = vsyncpa [#allocation3], 1
    %s829 = scalar_lea.sflag [#allocation3], 1
    %830 = vsyncpa %s829, 1

</llo_original>
